<compile_context>
chip_gen: v5e
topology: v5e:2x2
jax: 0.10.0
libtpu: 0.0.40
codegen_flags: <defaults>
</compile_context>

<pallas_src>
import jax
import jax.numpy as jnp
from jax.experimental import pallas as pl
from jax.experimental.pallas import tpu as pltpu


# ---------------------------------------------------------------------------
# Pallas kernel: fused encoder (Linear -> ReLU -> Linear) + decoder (Linear)
# Compute dtype: bf16 operands, fp32 accumulation, fp32 bias add / output.
# ---------------------------------------------------------------------------
def tst_forward_kernel(x_ref, w1_ref, b1_ref, w2_ref, b2_ref, w3_ref, b3_ref,
                       y_ref):
    # x_ref: [TB, 784] bf16 batch tile
    x = x_ref[...]

    # encoder layer 1: [TB, 784] @ [784, H] + [1, H], ReLU
    h = jnp.dot(x, w1_ref[...], preferred_element_type=jnp.float32) + b1_ref[...]
    h = jnp.maximum(h, 0.0).astype(jnp.bfloat16)

    # encoder layer 2 -> latent z: [TB, H] @ [H, L] + [1, L]
    z = jnp.dot(h, w2_ref[...], preferred_element_type=jnp.float32) + b2_ref[...]
    z = z.astype(jnp.bfloat16)

    # decoder (pyz): [TB, L] @ [L, C] + [1, C] -> class logits
    y = jnp.dot(z, w3_ref[...], preferred_element_type=jnp.float32) + b3_ref[...]

    y_ref[...] = y.astype(y_ref.dtype)


# ---------------------------------------------------------------------------
# Wrapper: batch tiling / padding, bf16 casts, VMEM-resident weights.
# ---------------------------------------------------------------------------
def tst_forward(x_nchw, params):
    """Eval-mode forward of TST (MNIST): returns class logits y of shape [B, C]."""
    w1, b1, w2, b2, w3, b3 = params
    B = x_nchw.shape[0]
    D = w1.shape[0]           # 784
    C = w3.shape[1]           # num_classes

    # Flatten + bf16 activations.
    x_flat = x_nchw.reshape(B, -1).astype(jnp.bfloat16)

    # Batch tile: 256 rows (MXU row tile on v6e/v7x) for large batches,
    # otherwise round tiny batches up to a multiple of 8 sublanes.
    TB = 256 if B >= 256 else max(8, ((B + 7) // 8) * 8)
    Bp = ((B + TB - 1) // TB) * TB
    if Bp != B:
        x_flat = jnp.pad(x_flat, ((0, Bp - B), (0, 0)))

    # bf16 weights (halves the dominant HBM->VMEM traffic); biases stay fp32
    # and are added to the fp32 accumulator.
    w1b = w1.astype(jnp.bfloat16)
    w2b = w2.astype(jnp.bfloat16)
    w3b = w3.astype(jnp.bfloat16)
    b1f = b1.astype(jnp.float32)
    b2f = b2.astype(jnp.float32)
    b3f = b3.astype(jnp.float32)

    # Weights/biases: full-array blocks mapped to (0, 0) on every grid step ->
    # DMA'd once, VMEM-resident across the batch loop.
    def resident(arr):
        return pl.BlockSpec(arr.shape, lambda i: (0, 0))

    grid = (Bp // TB,)

    y = pl.pallas_call(
        tst_forward_kernel,
        out_shape=jax.ShapeDtypeStruct((Bp, C), jnp.float32),
        grid=grid,
        in_specs=[
            pl.BlockSpec((TB, D), lambda i: (i, 0)),   # x: tiled along batch
            resident(w1b), resident(b1f),
            resident(w2b), resident(b2f),
            resident(w3b), resident(b3f),
        ],
        out_specs=pl.BlockSpec((TB, C), lambda i: (i, 0)),
        compiler_params=pltpu.CompilerParams(
            dimension_semantics=("parallel",),        # megacore batch sharding
            vmem_limit_bytes=16 * 1024 * 1024,        # real footprint ~2 MiB
        ),
    )(x_flat, w1b, b1f, w2b, b2f, w3b, b3f)

    return y[:B]


def init_params(key, in_dim=784, hidden=256, latent_dim=128, num_classes=10):
    """Deterministic synthetic parameter init (PyTorch Linear-like scaling)."""
    k1, k2, k3 = jax.random.split(key, 3)

    def linear(k, fan_in, fan_out):
        bound = 1.0 / jnp.sqrt(fan_in)
        kw, kb = jax.random.split(k)
        w = jax.random.uniform(kw, (fan_in, fan_out), jnp.float32, -bound, bound)
        b = jax.random.uniform(kb, (1, fan_out), jnp.float32, -bound, bound)
        return w, b

    w1, b1 = linear(k1, in_dim, hidden)           # encoder layer 1
    w2, b2 = linear(k2, hidden, latent_dim)       # encoder layer 2 (-> z)
    w3, b3 = linear(k3, latent_dim, num_classes)  # pyz label decoder
    return (w1, b1, w2, b2, w3, b3)


def reference_forward_bf16(x_nchw, params):
    """Pure-JAX reference matching the kernel's bf16-operand / fp32-acc math."""
    w1, b1, w2, b2, w3, b3 = params
    x = x_nchw.reshape(x_nchw.shape[0], -1).astype(jnp.bfloat16)
    h = jnp.dot(x, w1.astype(jnp.bfloat16),
                preferred_element_type=jnp.float32) + b1
    h = jnp.maximum(h, 0.0).astype(jnp.bfloat16)
    z = jnp.dot(h, w2.astype(jnp.bfloat16),
                preferred_element_type=jnp.float32) + b2
    z = z.astype(jnp.bfloat16)
    return jnp.dot(z, w3.astype(jnp.bfloat16),
                   preferred_element_type=jnp.float32) + b3


def reference_forward_fp32(x_nchw, params):
    """Full-fp32 reference (accuracy sanity check for the bf16 kernel)."""
    w1, b1, w2, b2, w3, b3 = params
    x = x_nchw.reshape(x_nchw.shape[0], -1).astype(jnp.float32)
    h = jnp.maximum(x @ w1 + b1, 0.0)
    z = h @ w2 + b2
    return z @ w3 + b3


if __name__ == "__main__":
    key = jax.random.PRNGKey(0)
    kx, kp = jax.random.split(key)

    # MNIST-shaped input, NCHW: batch=2, channels=1, 28x28
    x = jax.random.normal(kx, (2, 1, 28, 28), dtype=jnp.float32)

    params = init_params(kp, in_dim=28 * 28, hidden=256,
                         latent_dim=128, num_classes=10)

    y = tst_forward(x, params)
    y = jax.block_until_ready(y)

    assert y.shape == (2, 10), f"unexpected output shape {y.shape}"

    # Matches the bf16-operand reference tightly.
    y_ref_bf16 = reference_forward_bf16(x, params)
    assert jnp.allclose(y, y_ref_bf16, atol=2e-3, rtol=2e-3), \
        "mismatch vs bf16-matched reference"

    # And stays close to the fp32 math (bf16 quantization error only).
    y_ref_f32 = reference_forward_fp32(x, params)
    assert jnp.allclose(y, y_ref_f32, atol=5e-2, rtol=5e-2), \
        "mismatch vs fp32 reference"

    print("KERNEL_OK")
</pallas_src>

<mosaic_0001>
module attributes {stable_mosaic.version = 11 : i64} {
  func.func @tst_forward_kernel(%arg0: i32, %arg1: memref<8x784xbf16, #tpu.memory_space<vmem>>, %arg2: memref<784x256xbf16, #tpu.memory_space<vmem>>, %arg3: memref<1x256xf32, #tpu.memory_space<vmem>>, %arg4: memref<256x128xbf16, #tpu.memory_space<vmem>>, %arg5: memref<1x128xf32, #tpu.memory_space<vmem>>, %arg6: memref<128x10xbf16, #tpu.memory_space<vmem>>, %arg7: memref<1x10xf32, #tpu.memory_space<vmem>>, %arg8: memref<8x10xf32, #tpu.memory_space<vmem>>) attributes {dimension_semantics = [#tpu.dimension_semantics<parallel>], iteration_bounds = array<i64: 1>, scalar_prefetch = 0 : i64, scratch_operands = 0 : i64, tpu.core_type = #tpu.core_type<tc>, window_params = [{transform_indices = @transform_0, window_bounds = array<i64: 8, 784>}, {pipeline_mode = #tpu.pipeline_mode<synchronous>, transform_indices = @transform_1, window_bounds = array<i64: 784, 256>}, {pipeline_mode = #tpu.pipeline_mode<synchronous>, transform_indices = @transform_2, window_bounds = array<i64: 1, 256>}, {pipeline_mode = #tpu.pipeline_mode<synchronous>, transform_indices = @transform_3, window_bounds = array<i64: 256, 128>}, {pipeline_mode = #tpu.pipeline_mode<synchronous>, transform_indices = @transform_4, window_bounds = array<i64: 1, 128>}, {pipeline_mode = #tpu.pipeline_mode<synchronous>, transform_indices = @transform_5, window_bounds = array<i64: 128, 10>}, {pipeline_mode = #tpu.pipeline_mode<synchronous>, transform_indices = @transform_6, window_bounds = array<i64: 1, 10>}, {transform_indices = @transform_7, window_bounds = array<i64: 8, 10>}]} {
    %c0 = arith.constant 0 : index
    %c0_0 = arith.constant 0 : index
    %0 = vector.load %arg1[%c0, %c0_0] : memref<8x784xbf16, #tpu.memory_space<vmem>>, vector<8x784xbf16>
    %c0_1 = arith.constant 0 : index
    %c0_2 = arith.constant 0 : index
    %1 = vector.load %arg2[%c0_1, %c0_2] : memref<784x256xbf16, #tpu.memory_space<vmem>>, vector<784x256xbf16>
    %cst = arith.constant dense<0.000000e+00> : vector<8x256xf32>
    %2 = tpu.matmul %0, %1, %cst {dimension_numbers = #tpu.dot_dimension_numbers<[1], [0], [0], [1], [0, 0, 1, 1], [], []>} : vector<8x784xbf16>, vector<784x256xbf16>, vector<8x256xf32> -> vector<8x256xf32>
    %c0_3 = arith.constant 0 : index
    %c0_4 = arith.constant 0 : index
    %3 = vector.load %arg3[%c0_3, %c0_4] : memref<1x256xf32, #tpu.memory_space<vmem>>, vector<1x256xf32>
    %4 = vector.broadcast %3 : vector<1x256xf32> to vector<8x256xf32>
    %5 = arith.addf %2, %4 : vector<8x256xf32>
    %cst_5 = arith.constant 0.000000e+00 : f32
    %6 = vector.broadcast %cst_5 : f32 to vector<8x256xf32>
    %7 = arith.maximumf %5, %6 : vector<8x256xf32>
    %8 = arith.truncf %7 : vector<8x256xf32> to vector<8x256xbf16>
    %c0_6 = arith.constant 0 : index
    %c0_7 = arith.constant 0 : index
    %9 = vector.load %arg4[%c0_6, %c0_7] : memref<256x128xbf16, #tpu.memory_space<vmem>>, vector<256x128xbf16>
    %cst_8 = arith.constant dense<0.000000e+00> : vector<8x128xf32>
    %10 = tpu.matmul %8, %9, %cst_8 {dimension_numbers = #tpu.dot_dimension_numbers<[1], [0], [0], [1], [0, 0, 1, 1], [], []>} : vector<8x256xbf16>, vector<256x128xbf16>, vector<8x128xf32> -> vector<8x128xf32>
    %c0_9 = arith.constant 0 : index
    %c0_10 = arith.constant 0 : index
    %11 = vector.load %arg5[%c0_9, %c0_10] : memref<1x128xf32, #tpu.memory_space<vmem>>, vector<1x128xf32>
    %12 = vector.broadcast %11 : vector<1x128xf32> to vector<8x128xf32>
    %13 = arith.addf %10, %12 : vector<8x128xf32>
    %14 = arith.truncf %13 : vector<8x128xf32> to vector<8x128xbf16>
    %c0_11 = arith.constant 0 : index
    %c0_12 = arith.constant 0 : index
    %15 = vector.load %arg6[%c0_11, %c0_12] : memref<128x10xbf16, #tpu.memory_space<vmem>>, vector<128x10xbf16>
    %cst_13 = arith.constant dense<0.000000e+00> : vector<8x10xf32>
    %16 = tpu.matmul %14, %15, %cst_13 {dimension_numbers = #tpu.dot_dimension_numbers<[1], [0], [0], [1], [0, 0, 1, 1], [], []>} : vector<8x128xbf16>, vector<128x10xbf16>, vector<8x10xf32> -> vector<8x10xf32>
    %c0_14 = arith.constant 0 : index
    %c0_15 = arith.constant 0 : index
    %17 = vector.load %arg7[%c0_14, %c0_15] : memref<1x10xf32, #tpu.memory_space<vmem>>, vector<1x10xf32>
    %18 = vector.broadcast %17 : vector<1x10xf32> to vector<8x10xf32>
    %19 = arith.addf %16, %18 : vector<8x10xf32>
    %c0_16 = arith.constant 0 : index
    %c0_17 = arith.constant 0 : index
    %20 = vector.load %arg8[%c0_16, %c0_17] : memref<8x10xf32, #tpu.memory_space<vmem>>, vector<8x10xf32>
    tpu.vector_store %arg8[%c0_16, %c0_17], %19 {strides = array<i32>} : memref<8x10xf32, #tpu.memory_space<vmem>>, vector<8x10xf32>,
    return
  }
  func.func @transform_0(%arg0: i32) -> (i32, i32) {
    %c0_i32 = arith.constant 0 : i32
    %c0_i32_0 = arith.constant 0 : i32
    return %arg0, %c0_i32 : i32, i32
  }
  func.func @transform_1(%arg0: i32) -> (i32, i32) {
    %c0_i32 = arith.constant 0 : i32
    %c0_i32_0 = arith.constant 0 : i32
    %c0_i32_1 = arith.constant 0 : i32
    return %c0_i32, %c0_i32_0 : i32, i32
  }
  func.func @transform_2(%arg0: i32) -> (i32, i32) {
    %c0_i32 = arith.constant 0 : i32
    %c0_i32_0 = arith.constant 0 : i32
    %c0_i32_1 = arith.constant 0 : i32
    return %c0_i32, %c0_i32_0 : i32, i32
  }
  func.func @transform_3(%arg0: i32) -> (i32, i32) {
    %c0_i32 = arith.constant 0 : i32
    %c0_i32_0 = arith.constant 0 : i32
    %c0_i32_1 = arith.constant 0 : i32
    return %c0_i32, %c0_i32_0 : i32, i32
  }
  func.func @transform_4(%arg0: i32) -> (i32, i32) {
    %c0_i32 = arith.constant 0 : i32
    %c0_i32_0 = arith.constant 0 : i32
    %c0_i32_1 = arith.constant 0 : i32
    return %c0_i32, %c0_i32_0 : i32, i32
  }
  func.func @transform_5(%arg0: i32) -> (i32, i32) {
    %c0_i32 = arith.constant 0 : i32
    %c0_i32_0 = arith.constant 0 : i32
    %c0_i32_1 = arith.constant 0 : i32
    return %c0_i32, %c0_i32_0 : i32, i32
  }
  func.func @transform_6(%arg0: i32) -> (i32, i32) {
    %c0_i32 = arith.constant 0 : i32
    %c0_i32_0 = arith.constant 0 : i32
    %c0_i32_1 = arith.constant 0 : i32
    return %c0_i32, %c0_i32_0 : i32, i32
  }
  func.func @transform_7(%arg0: i32) -> (i32, i32) {
    %c0_i32 = arith.constant 0 : i32
    %c0_i32_0 = arith.constant 0 : i32
    return %arg0, %c0_i32 : i32, i32
  }
}

</mosaic_0001>

<llo_original>
// kernel: tpu_custom_call.1
$region0: #{tpu_custom_call.1}
  #allocation0 [shape = 'u32[]', space=smem, size = 0x4, offset = 0x4, fixed_abs, tag = 'smem constant byte address 0x4 - core index']
  #allocation1 [shape = 'u32[72,128]{1,0:T(1,128)}', space=vmem, size = 0x9000, scoped, tag = 'internal scratch']
  %s0 = inlined_call_operand.vmem [shape: bf16[8,784], index: 0, kind: input, shape index: {}]
  %s1 = inlined_call_operand.hbm [shape: bf16[784,256], index: 1, kind: input, shape index: {}]
  %s2 = inlined_call_operand.vmem [shape: f32[1,256], index: 2, kind: input, shape index: {}]
  %s3 = inlined_call_operand.hbm [shape: bf16[256,128], index: 3, kind: input, shape index: {}]
  %s4 = inlined_call_operand.vmem [shape: f32[1,128], index: 4, kind: input, shape index: {}]
  %s5 = inlined_call_operand.vmem [shape: bf16[128,10], index: 5, kind: input, shape index: {}]
  %s6 = inlined_call_operand.vmem [shape: f32[1,10], index: 6, kind: input, shape index: {}]
  %s7 = inlined_call_operand.hbm [shape: f32[8,10], index: 7, kind: output, shape index: {}]
  %s8 = sld [smem:[#allocation0]]
  $region46: #{tpu_custom_call.1} parent=0
    _
  %s10 = ssub.s32 1, %s8
  %s11 = scalar_select 0, %s10, %s8
  $region1: #{tpu_custom_call.1} parent=0
    #allocation2 [shape = 'u8[401408]{0}', space=vmem, size = 0x62000, scoped, tag = 'input window, operand 1, single buffered']
    #allocation3 [shape = 's32[1]{0}', space=sflag, size = 0x4, scoped, tag = 'scoped memory for tpu_custom_call.1']
    #allocation4 [shape = 's32[1]{0}', space=sflag, size = 0x4, scoped, tag = 'scoped memory for tpu_custom_call.1']
    #allocation5 [shape = 'u8[65536]{0}', space=vmem, size = 0x10000, scoped, tag = 'input window, operand 3, single buffered']
    #allocation6 [shape = 's32[1]{0}', space=sflag, size = 0x4, scoped, tag = 'scoped memory for tpu_custom_call.1']
    #allocation7 [shape = 'u8[4096]{0}', space=vmem, size = 0x1000, scoped, tag = 'output window, operand 0, single buffered']
    %12 = vsyncpa [#allocation3], 0
    %13 = vsyncpa [#allocation6], 0
    %14 = vsyncpa [#allocation4], 0
    // Predicated region
    $region2: #{tpu_custom_call.1} parent=1 // pred_check
      _
    $region3: #{tpu_custom_call.1} parent=1 // pred_check_branch
      %16 = sbr.rel (0) target = $region5
    $region4: #{tpu_custom_call.1} parent=1 // pred_region
      _
    $region5: #{tpu_custom_call.1} parent=1 // pred_fallthru
      _
    // Predicated region
    $region6: #{tpu_custom_call.1} parent=1 // pred_check
      _
    $region7: #{tpu_custom_call.1} parent=1 // pred_check_branch
      %18 = sbr.rel (0) target = $region9
    $region8: #{tpu_custom_call.1} parent=1 // pred_region
      %20 = vsyncadd [#allocation3], 0
      %s21 = sshll.u32 %s1, 4
      %s22 = int_to_ptr.hbm [resolvable:$true] %s21
      %s23 = sshll.u32 [#allocation2], 4
      %s24 = int_to_ptr.vmem [resolvable:$true] %s23
      %29 = dma.hbm_to_vmem [thread:$0]  %s22, 12544, %s24, [#allocation3], 128, 128, 8
    $region9: #{tpu_custom_call.1} parent=1 // pred_fallthru
      _
    // Predicated region
    $region10: #{tpu_custom_call.1} parent=1 // pred_check
      _
    $region11: #{tpu_custom_call.1} parent=1 // pred_check_branch
      %31 = sbr.rel (0) target = $region13
    $region12: #{tpu_custom_call.1} parent=1 // pred_region
      _
    $region13: #{tpu_custom_call.1} parent=1 // pred_fallthru
      _
    // Predicated region
    $region14: #{tpu_custom_call.1} parent=1 // pred_check
      _
    $region15: #{tpu_custom_call.1} parent=1 // pred_check_branch
      %33 = sbr.rel (0) target = $region17
    $region16: #{tpu_custom_call.1} parent=1 // pred_region
      %35 = vsyncadd [#allocation6], 0
      %s36 = sshll.u32 %s3, 4
      %s37 = int_to_ptr.hbm [resolvable:$true] %s36
      %s38 = sshll.u32 [#allocation5], 4
      %s39 = int_to_ptr.vmem [resolvable:$true] %s38
      %44 = dma.hbm_to_vmem [thread:$0]  %s37, 2048, %s39, [#allocation6], 64, 64, 4
    $region17: #{tpu_custom_call.1} parent=1 // pred_fallthru
      _
    // Predicated region
    $region18: #{tpu_custom_call.1} parent=1 // pred_check
      _
    $region19: #{tpu_custom_call.1} parent=1 // pred_check_branch
      %46 = sbr.rel (0) target = $region21
    $region20: #{tpu_custom_call.1} parent=1 // pred_region
      _
    $region21: #{tpu_custom_call.1} parent=1 // pred_fallthru
      _
    // Predicated region
    $region22: #{tpu_custom_call.1} parent=1 // pred_check
      _
    $region23: #{tpu_custom_call.1} parent=1 // pred_check_branch
      %48 = sbr.rel (0) target = $region25
    $region24: #{tpu_custom_call.1} parent=1 // pred_region
      _
    $region25: #{tpu_custom_call.1} parent=1 // pred_fallthru
      _
    // Predicated region
    $region26: #{tpu_custom_call.1} parent=1 // pred_check
      _
    $region27: #{tpu_custom_call.1} parent=1 // pred_check_branch
      %50 = sbr.rel (0) target = $region29
    $region28: #{tpu_custom_call.1} parent=1 // pred_region
      _
    $region29: #{tpu_custom_call.1} parent=1 // pred_fallthru
      _
    // Predicated region
    $region30: #{tpu_custom_call.1} parent=1 // pred_check
      _
    $region31: #{tpu_custom_call.1} parent=1 // pred_check_branch
      %52 = sbr.rel (0) target = $region33
    $region32: #{tpu_custom_call.1} parent=1 // pred_region
      %54 = dma.done [#allocation3], 12544
    $region33: #{tpu_custom_call.1} parent=1 // pred_fallthru
      _
    // Predicated region
    $region34: #{tpu_custom_call.1} parent=1 // pred_check
      _
    $region35: #{tpu_custom_call.1} parent=1 // pred_check_branch
      %56 = sbr.rel (0) target = $region37
    $region36: #{tpu_custom_call.1} parent=1 // pred_region
      %58 = dma.done [#allocation6], 2048
    $region37: #{tpu_custom_call.1} parent=1 // pred_fallthru
      _
    %v60 = vld [vmem:[%s0] sm:$0xff]
    %v61 = vld [vmem:[%s0 + $0x8] sm:$0xff]
    %v62 = vld [vmem:[%s0 + $0x10] sm:$0xff]
    %v63 = vld [vmem:[%s0 + $0x18] sm:$0xf]
    %v64 = vld [vmem:[#allocation2] sm:$0xff]
    %v65 = vld [vmem:[#allocation2 + $0x8] sm:$0xff]
    %v66 = vld [vmem:[#allocation2 + $0x10] sm:$0xff]
    %v67 = vld [vmem:[#allocation2 + $0x18] sm:$0xff]
    %v68 = vld [vmem:[#allocation2 + $0x20] sm:$0xff]
    %v69 = vld [vmem:[#allocation2 + $0x28] sm:$0xff]
    %v70 = vld [vmem:[#allocation2 + $0x30] sm:$0xff]
    %v71 = vld [vmem:[#allocation2 + $0x38] sm:$0xff]
    %v72 = vld [vmem:[#allocation2 + $0x40] sm:$0xff]
    %v73 = vld [vmem:[#allocation2 + $0x48] sm:$0xff]
    %v74 = vld [vmem:[#allocation2 + $0x50] sm:$0xff]
    %v75 = vld [vmem:[#allocation2 + $0x58] sm:$0xff]
    %v76 = vld [vmem:[#allocation2 + $0x60] sm:$0xff]
    %v77 = vld [vmem:[#allocation2 + $0x68] sm:$0xff]
    %v78 = vld [vmem:[#allocation2 + $0x70] sm:$0xff]
    %v79 = vld [vmem:[#allocation2 + $0x78] sm:$0xff]
    %v80 = vld [vmem:[#allocation2 + $0x80] sm:$0xff]
    %v81 = vld [vmem:[#allocation2 + $0x88] sm:$0xff]
    %v82 = vld [vmem:[#allocation2 + $0x90] sm:$0xff]
    %v83 = vld [vmem:[#allocation2 + $0x98] sm:$0xff]
    %v84 = vld [vmem:[#allocation2 + $0xa0] sm:$0xff]
    %v85 = vld [vmem:[#allocation2 + $0xa8] sm:$0xff]
    %v86 = vld [vmem:[#allocation2 + $0xb0] sm:$0xff]
    %v87 = vld [vmem:[#allocation2 + $0xb8] sm:$0xff]
    %v88 = vld [vmem:[#allocation2 + $0xc0] sm:$0xff]
    %v89 = vld [vmem:[#allocation2 + $0xc8] sm:$0xff]
    %v90 = vld [vmem:[#allocation2 + $0xd0] sm:$0xff]
    %v91 = vld [vmem:[#allocation2 + $0xd8] sm:$0xff]
    %v92 = vld [vmem:[#allocation2 + $0xe0] sm:$0xff]
    %v93 = vld [vmem:[#allocation2 + $0xe8] sm:$0xff]
    %v94 = vld [vmem:[#allocation2 + $0xf0] sm:$0xff]
    %v95 = vld [vmem:[#allocation2 + $0xf8] sm:$0xff]
    %v96 = vld [vmem:[#allocation2 + $0x100] sm:$0xff]
    %v97 = vld [vmem:[#allocation2 + $0x108] sm:$0xff]
    %v98 = vld [vmem:[#allocation2 + $0x110] sm:$0xff]
    %v99 = vld [vmem:[#allocation2 + $0x118] sm:$0xff]
    %v100 = vld [vmem:[#allocation2 + $0x120] sm:$0xff]
    %v101 = vld [vmem:[#allocation2 + $0x128] sm:$0xff]
    %v102 = vld [vmem:[#allocation2 + $0x130] sm:$0xff]
    %v103 = vld [vmem:[#allocation2 + $0x138] sm:$0xff]
    %v104 = vld [vmem:[#allocation2 + $0x140] sm:$0xff]
    %v105 = vld [vmem:[#allocation2 + $0x148] sm:$0xff]
    %v106 = vld [vmem:[#allocation2 + $0x150] sm:$0xff]
    %v107 = vld [vmem:[#allocation2 + $0x158] sm:$0xff]
    %v108 = vld [vmem:[#allocation2 + $0x160] sm:$0xff]
    %v109 = vld [vmem:[#allocation2 + $0x168] sm:$0xff]
    %v110 = vld [vmem:[#allocation2 + $0x170] sm:$0xff]
    %v111 = vld [vmem:[#allocation2 + $0x178] sm:$0xff]
    %v112 = vld [vmem:[#allocation2 + $0x180] sm:$0xff]
    %v113 = vld [vmem:[#allocation2 + $0x188] sm:$0xff]
    %v114 = vld [vmem:[#allocation2 + $0x190] sm:$0xff]
    %v115 = vld [vmem:[#allocation2 + $0x198] sm:$0xff]
    %v116 = vld [vmem:[#allocation2 + $0x1a0] sm:$0xff]
    %v117 = vld [vmem:[#allocation2 + $0x1a8] sm:$0xff]
    %v118 = vld [vmem:[#allocation2 + $0x1b0] sm:$0xff]
    %v119 = vld [vmem:[#allocation2 + $0x1b8] sm:$0xff]
    %v120 = vld [vmem:[#allocation2 + $0x1c0] sm:$0xff]
    %v121 = vld [vmem:[#allocation2 + $0x1c8] sm:$0xff]
    %v122 = vld [vmem:[#allocation2 + $0x1d0] sm:$0xff]
    %v123 = vld [vmem:[#allocation2 + $0x1d8] sm:$0xff]
    %v124 = vld [vmem:[#allocation2 + $0x1e0] sm:$0xff]
    %v125 = vld [vmem:[#allocation2 + $0x1e8] sm:$0xff]
    %v126 = vld [vmem:[#allocation2 + $0x1f0] sm:$0xff]
    %v127 = vld [vmem:[#allocation2 + $0x1f8] sm:$0xff]
    %v128 = vld [vmem:[#allocation2 + $0x200] sm:$0xff]
    %v129 = vld [vmem:[#allocation2 + $0x208] sm:$0xff]
    %v130 = vld [vmem:[#allocation2 + $0x210] sm:$0xff]
    %v131 = vld [vmem:[#allocation2 + $0x218] sm:$0xff]
    %v132 = vld [vmem:[#allocation2 + $0x220] sm:$0xff]
    %v133 = vld [vmem:[#allocation2 + $0x228] sm:$0xff]
    %v134 = vld [vmem:[#allocation2 + $0x230] sm:$0xff]
    %v135 = vld [vmem:[#allocation2 + $0x238] sm:$0xff]
    %v136 = vld [vmem:[#allocation2 + $0x240] sm:$0xff]
    %v137 = vld [vmem:[#allocation2 + $0x248] sm:$0xff]
    %v138 = vld [vmem:[#allocation2 + $0x250] sm:$0xff]
    %v139 = vld [vmem:[#allocation2 + $0x258] sm:$0xff]
    %v140 = vld [vmem:[#allocation2 + $0x260] sm:$0xff]
    %v141 = vld [vmem:[#allocation2 + $0x268] sm:$0xff]
    %v142 = vld [vmem:[#allocation2 + $0x270] sm:$0xff]
    %v143 = vld [vmem:[#allocation2 + $0x278] sm:$0xff]
    %v144 = vld [vmem:[#allocation2 + $0x280] sm:$0xff]
    %v145 = vld [vmem:[#allocation2 + $0x288] sm:$0xff]
    %v146 = vld [vmem:[#allocation2 + $0x290] sm:$0xff]
    %v147 = vld [vmem:[#allocation2 + $0x298] sm:$0xff]
    %v148 = vld [vmem:[#allocation2 + $0x2a0] sm:$0xff]
    %v149 = vld [vmem:[#allocation2 + $0x2a8] sm:$0xff]
    %v150 = vld [vmem:[#allocation2 + $0x2b0] sm:$0xff]
    %v151 = vld [vmem:[#allocation2 + $0x2b8] sm:$0xff]
    %v152 = vld [vmem:[#allocation2 + $0x2c0] sm:$0xff]
    %v153 = vld [vmem:[#allocation2 + $0x2c8] sm:$0xff]
    %v154 = vld [vmem:[#allocation2 + $0x2d0] sm:$0xff]
    %v155 = vld [vmem:[#allocation2 + $0x2d8] sm:$0xff]
    %v156 = vld [vmem:[#allocation2 + $0x2e0] sm:$0xff]
    %v157 = vld [vmem:[#allocation2 + $0x2e8] sm:$0xff]
    %v158 = vld [vmem:[#allocation2 + $0x2f0] sm:$0xff]
    %v159 = vld [vmem:[#allocation2 + $0x2f8] sm:$0xff]
    %v160 = vld [vmem:[#allocation2 + $0x300] sm:$0xff]
    %v161 = vld [vmem:[#allocation2 + $0x308] sm:$0xff]
    %v162 = vld [vmem:[%s2] sm:$0x3]
    %v164 = vperm.slane %v162, 0
    %v165 = vperm.slane %v162, 1
    %v172 = vunpack.c.l.b16 %v60
    %v173 = vunpack.c.h.b16 %v60
    %v174 = vunpack.c.l.b16 %v61
    %v175 = vunpack.c.h.b16 %v61
    %v176 = vunpack.c.l.b16 %v62
    %v177 = vunpack.c.h.b16 %v62
    %v178 = vunpack.c.l.b16 %v63
    %v179 = vpack.c.b16 %v172, %v172
    %v180 = vpack.c.b16 %v173, %v173
    %v181 = vpack.c.b16 %v174, %v174
    %v182 = vpack.c.b16 %v175, %v175
    %v183 = vpack.c.b16 %v176, %v176
    %v184 = vpack.c.b16 %v177, %v177
    %v185 = vpack.c.b16 %v178, %v178
    %v290 = vunpack.c.l.b16 %v64
    %v291 = vunpack.c.h.b16 %v64
    %v292 = vunpack.c.l.b16 %v65
    %v293 = vunpack.c.h.b16 %v65
    %v294 = vunpack.c.l.b16 %v66
    %v295 = vunpack.c.h.b16 %v66
    %v296 = vunpack.c.l.b16 %v67
    %v297 = vunpack.c.h.b16 %v67
    %v298 = vunpack.c.l.b16 %v68
    %v299 = vunpack.c.h.b16 %v68
    %v300 = vunpack.c.l.b16 %v69
    %v301 = vunpack.c.h.b16 %v69
    %v302 = vunpack.c.l.b16 %v70
    %v303 = vunpack.c.h.b16 %v70
    %v304 = vunpack.c.l.b16 %v71
    %v305 = vunpack.c.h.b16 %v71
    %v306 = vunpack.c.l.b16 %v72
    %v307 = vunpack.c.h.b16 %v72
    %v308 = vunpack.c.l.b16 %v73
    %v309 = vunpack.c.h.b16 %v73
    %v310 = vunpack.c.l.b16 %v74
    %v311 = vunpack.c.h.b16 %v74
    %v312 = vunpack.c.l.b16 %v75
    %v313 = vunpack.c.h.b16 %v75
    %v314 = vunpack.c.l.b16 %v76
    %v315 = vunpack.c.h.b16 %v76
    %v316 = vunpack.c.l.b16 %v77
    %v317 = vunpack.c.h.b16 %v77
    %v318 = vunpack.c.l.b16 %v78
    %v319 = vunpack.c.h.b16 %v78
    %v320 = vunpack.c.l.b16 %v79
    %v321 = vunpack.c.h.b16 %v79
    %v322 = vunpack.c.l.b16 %v80
    %v323 = vunpack.c.h.b16 %v80
    %v324 = vunpack.c.l.b16 %v81
    %v325 = vunpack.c.h.b16 %v81
    %v326 = vunpack.c.l.b16 %v82
    %v327 = vunpack.c.h.b16 %v82
    %v328 = vunpack.c.l.b16 %v83
    %v329 = vunpack.c.h.b16 %v83
    %v330 = vunpack.c.l.b16 %v84
    %v331 = vunpack.c.h.b16 %v84
    %v332 = vunpack.c.l.b16 %v85
    %v333 = vunpack.c.h.b16 %v85
    %v334 = vunpack.c.l.b16 %v86
    %v335 = vunpack.c.h.b16 %v86
    %v336 = vunpack.c.l.b16 %v87
    %v337 = vunpack.c.h.b16 %v87
    %v338 = vunpack.c.l.b16 %v88
    %v339 = vunpack.c.h.b16 %v88
    %v340 = vunpack.c.l.b16 %v89
    %v341 = vunpack.c.h.b16 %v89
    %v342 = vunpack.c.l.b16 %v90
    %v343 = vunpack.c.h.b16 %v90
    %v344 = vunpack.c.l.b16 %v91
    %v345 = vunpack.c.h.b16 %v91
    %v346 = vunpack.c.l.b16 %v92
    %v347 = vunpack.c.h.b16 %v92
    %v348 = vunpack.c.l.b16 %v93
    %v349 = vunpack.c.h.b16 %v93
    %v350 = vunpack.c.l.b16 %v94
    %v351 = vunpack.c.h.b16 %v94
    %v352 = vunpack.c.l.b16 %v95
    %v353 = vunpack.c.h.b16 %v95
    %v354 = vunpack.c.l.b16 %v96
    %v355 = vunpack.c.h.b16 %v96
    %v356 = vunpack.c.l.b16 %v97
    %v357 = vunpack.c.h.b16 %v97
    %v358 = vunpack.c.l.b16 %v98
    %v359 = vunpack.c.h.b16 %v98
    %v360 = vunpack.c.l.b16 %v99
    %v361 = vunpack.c.h.b16 %v99
    %v362 = vunpack.c.l.b16 %v100
    %v363 = vunpack.c.h.b16 %v100
    %v364 = vunpack.c.l.b16 %v101
    %v365 = vunpack.c.h.b16 %v101
    %v366 = vunpack.c.l.b16 %v102
    %v367 = vunpack.c.h.b16 %v102
    %v368 = vunpack.c.l.b16 %v103
    %v369 = vunpack.c.h.b16 %v103
    %v370 = vunpack.c.l.b16 %v104
    %v371 = vunpack.c.h.b16 %v104
    %v372 = vunpack.c.l.b16 %v105
    %v373 = vunpack.c.h.b16 %v105
    %v374 = vunpack.c.l.b16 %v106
    %v375 = vunpack.c.h.b16 %v106
    %v376 = vunpack.c.l.b16 %v107
    %v377 = vunpack.c.h.b16 %v107
    %v378 = vunpack.c.l.b16 %v108
    %v379 = vunpack.c.h.b16 %v108
    %v380 = vunpack.c.l.b16 %v109
    %v381 = vunpack.c.h.b16 %v109
    %v382 = vunpack.c.l.b16 %v110
    %v383 = vunpack.c.h.b16 %v110
    %v384 = vunpack.c.l.b16 %v111
    %v385 = vunpack.c.h.b16 %v111
    %v386 = vunpack.c.l.b16 %v112
    %v387 = vunpack.c.h.b16 %v112
    %v388 = vunpack.c.l.b16 %v113
    %v389 = vunpack.c.h.b16 %v113
    %v390 = vunpack.c.l.b16 %v114
    %v391 = vunpack.c.h.b16 %v114
    %v392 = vunpack.c.l.b16 %v115
    %v393 = vunpack.c.h.b16 %v115
    %v394 = vunpack.c.l.b16 %v116
    %v395 = vunpack.c.h.b16 %v116
    %v396 = vunpack.c.l.b16 %v117
    %v397 = vunpack.c.h.b16 %v117
    %v398 = vunpack.c.l.b16 %v118
    %v399 = vunpack.c.h.b16 %v118
    %v400 = vunpack.c.l.b16 %v119
    %v401 = vunpack.c.h.b16 %v119
    %v402 = vunpack.c.l.b16 %v120
    %v403 = vunpack.c.h.b16 %v120
    %v404 = vunpack.c.l.b16 %v121
    %v405 = vunpack.c.h.b16 %v121
    %v406 = vunpack.c.l.b16 %v122
    %v407 = vunpack.c.h.b16 %v122
    %v408 = vunpack.c.l.b16 %v123
    %v409 = vunpack.c.h.b16 %v123
    %v410 = vunpack.c.l.b16 %v124
    %v411 = vunpack.c.h.b16 %v124
    %v412 = vunpack.c.l.b16 %v125
    %v413 = vunpack.c.h.b16 %v125
    %v414 = vunpack.c.l.b16 %v126
    %v415 = vunpack.c.h.b16 %v126
    %v416 = vunpack.c.l.b16 %v127
    %v417 = vunpack.c.h.b16 %v127
    %v418 = vunpack.c.l.b16 %v128
    %v419 = vunpack.c.h.b16 %v128
    %v420 = vunpack.c.l.b16 %v129
    %v421 = vunpack.c.h.b16 %v129
    %v422 = vunpack.c.l.b16 %v130
    %v423 = vunpack.c.h.b16 %v130
    %v424 = vunpack.c.l.b16 %v131
    %v425 = vunpack.c.h.b16 %v131
    %v426 = vunpack.c.l.b16 %v132
    %v427 = vunpack.c.h.b16 %v132
    %v428 = vunpack.c.l.b16 %v133
    %v429 = vunpack.c.h.b16 %v133
    %v430 = vunpack.c.l.b16 %v134
    %v431 = vunpack.c.h.b16 %v134
    %v432 = vunpack.c.l.b16 %v135
    %v433 = vunpack.c.h.b16 %v135
    %v434 = vunpack.c.l.b16 %v136
    %v435 = vunpack.c.h.b16 %v136
    %v436 = vunpack.c.l.b16 %v137
    %v437 = vunpack.c.h.b16 %v137
    %v438 = vunpack.c.l.b16 %v138
    %v439 = vunpack.c.h.b16 %v138
    %v440 = vunpack.c.l.b16 %v139
    %v441 = vunpack.c.h.b16 %v139
    %v442 = vunpack.c.l.b16 %v140
    %v443 = vunpack.c.h.b16 %v140
    %v444 = vunpack.c.l.b16 %v141
    %v445 = vunpack.c.h.b16 %v141
    %v446 = vunpack.c.l.b16 %v142
    %v447 = vunpack.c.h.b16 %v142
    %v448 = vunpack.c.l.b16 %v143
    %v449 = vunpack.c.h.b16 %v143
    %v450 = vunpack.c.l.b16 %v144
    %v451 = vunpack.c.h.b16 %v144
    %v452 = vunpack.c.l.b16 %v145
    %v453 = vunpack.c.h.b16 %v145
    %v454 = vunpack.c.l.b16 %v146
    %v455 = vunpack.c.h.b16 %v146
    %v456 = vunpack.c.l.b16 %v147
    %v457 = vunpack.c.h.b16 %v147
    %v458 = vunpack.c.l.b16 %v148
    %v459 = vunpack.c.h.b16 %v148
    %v460 = vunpack.c.l.b16 %v149
    %v461 = vunpack.c.h.b16 %v149
    %v462 = vunpack.c.l.b16 %v150
    %v463 = vunpack.c.h.b16 %v150
    %v464 = vunpack.c.l.b16 %v151
    %v465 = vunpack.c.h.b16 %v151
    %v466 = vunpack.c.l.b16 %v152
    %v467 = vunpack.c.h.b16 %v152
    %v468 = vunpack.c.l.b16 %v153
    %v469 = vunpack.c.h.b16 %v153
    %v470 = vunpack.c.l.b16 %v154
    %v471 = vunpack.c.h.b16 %v154
    %v472 = vunpack.c.l.b16 %v155
    %v473 = vunpack.c.h.b16 %v155
    %v474 = vunpack.c.l.b16 %v156
    %v475 = vunpack.c.h.b16 %v156
    %v476 = vunpack.c.l.b16 %v157
    %v477 = vunpack.c.h.b16 %v157
    %v478 = vunpack.c.l.b16 %v158
    %v479 = vunpack.c.h.b16 %v158
    %v480 = vunpack.c.l.b16 %v159
    %v481 = vunpack.c.h.b16 %v159
    %v482 = vunpack.c.l.b16 %v160
    %v483 = vunpack.c.h.b16 %v160
    %v484 = vunpack.c.l.b16 %v161
    %v485 = vunpack.c.h.b16 %v161
    %v486 = vpack.c.b16 %v292, %v290
    %v487 = vpack.c.b16 %v293, %v291
    %v488 = vpack.c.b16 %v296, %v294
    %v489 = vpack.c.b16 %v297, %v295
    %v490 = vpack.c.b16 %v300, %v298
    %v491 = vpack.c.b16 %v301, %v299
    %v492 = vpack.c.b16 %v304, %v302
    %v493 = vpack.c.b16 %v305, %v303
    %v494 = vpack.c.b16 %v308, %v306
    %v495 = vpack.c.b16 %v309, %v307
    %v496 = vpack.c.b16 %v312, %v310
    %v497 = vpack.c.b16 %v313, %v311
    %v498 = vpack.c.b16 %v316, %v314
    %v499 = vpack.c.b16 %v317, %v315
    %v500 = vpack.c.b16 %v320, %v318
    %v501 = vpack.c.b16 %v321, %v319
    %v502 = vpack.c.b16 %v324, %v322
    %v503 = vpack.c.b16 %v325, %v323
    %v504 = vpack.c.b16 %v328, %v326
    %v505 = vpack.c.b16 %v329, %v327
    %v506 = vpack.c.b16 %v332, %v330
    %v507 = vpack.c.b16 %v333, %v331
    %v508 = vpack.c.b16 %v336, %v334
    %v509 = vpack.c.b16 %v337, %v335
    %v510 = vpack.c.b16 %v340, %v338
    %v511 = vpack.c.b16 %v341, %v339
    %v512 = vpack.c.b16 %v344, %v342
    %v513 = vpack.c.b16 %v345, %v343
    %v514 = vpack.c.b16 %v348, %v346
    %v515 = vpack.c.b16 %v349, %v347
    %v516 = vpack.c.b16 %v352, %v350
    %v517 = vpack.c.b16 %v353, %v351
    %v518 = vpack.c.b16 %v356, %v354
    %v519 = vpack.c.b16 %v357, %v355
    %v520 = vpack.c.b16 %v360, %v358
    %v521 = vpack.c.b16 %v361, %v359
    %v522 = vpack.c.b16 %v364, %v362
    %v523 = vpack.c.b16 %v365, %v363
    %v524 = vpack.c.b16 %v368, %v366
    %v525 = vpack.c.b16 %v369, %v367
    %v526 = vpack.c.b16 %v372, %v370
    %v527 = vpack.c.b16 %v373, %v371
    %v528 = vpack.c.b16 %v376, %v374
    %v529 = vpack.c.b16 %v377, %v375
    %v530 = vpack.c.b16 %v380, %v378
    %v531 = vpack.c.b16 %v381, %v379
    %v532 = vpack.c.b16 %v384, %v382
    %v533 = vpack.c.b16 %v385, %v383
    %v534 = vpack.c.b16 %v388, %v386
    %v535 = vpack.c.b16 %v389, %v387
    %v536 = vpack.c.b16 %v392, %v390
    %v537 = vpack.c.b16 %v393, %v391
    %v538 = vpack.c.b16 %v396, %v394
    %v539 = vpack.c.b16 %v397, %v395
    %v540 = vpack.c.b16 %v400, %v398
    %v541 = vpack.c.b16 %v401, %v399
    %v542 = vpack.c.b16 %v404, %v402
    %v543 = vpack.c.b16 %v405, %v403
    %v544 = vpack.c.b16 %v408, %v406
    %v545 = vpack.c.b16 %v409, %v407
    %v546 = vpack.c.b16 %v412, %v410
    %v547 = vpack.c.b16 %v413, %v411
    %v548 = vpack.c.b16 %v416, %v414
    %v549 = vpack.c.b16 %v417, %v415
    %v550 = vpack.c.b16 %v420, %v418
    %v551 = vpack.c.b16 %v421, %v419
    %v552 = vpack.c.b16 %v424, %v422
    %v553 = vpack.c.b16 %v425, %v423
    %v554 = vpack.c.b16 %v428, %v426
    %v555 = vpack.c.b16 %v429, %v427
    %v556 = vpack.c.b16 %v432, %v430
    %v557 = vpack.c.b16 %v433, %v431
    %v558 = vpack.c.b16 %v436, %v434
    %v559 = vpack.c.b16 %v437, %v435
    %v560 = vpack.c.b16 %v440, %v438
    %v561 = vpack.c.b16 %v441, %v439
    %v562 = vpack.c.b16 %v444, %v442
    %v563 = vpack.c.b16 %v445, %v443
    %v564 = vpack.c.b16 %v448, %v446
    %v565 = vpack.c.b16 %v449, %v447
    %v566 = vpack.c.b16 %v452, %v450
    %v567 = vpack.c.b16 %v453, %v451
    %v568 = vpack.c.b16 %v456, %v454
    %v569 = vpack.c.b16 %v457, %v455
    %v570 = vpack.c.b16 %v460, %v458
    %v571 = vpack.c.b16 %v461, %v459
    %v572 = vpack.c.b16 %v464, %v462
    %v573 = vpack.c.b16 %v465, %v463
    %v574 = vpack.c.b16 %v468, %v466
    %v575 = vpack.c.b16 %v469, %v467
    %v576 = vpack.c.b16 %v472, %v470
    %v577 = vpack.c.b16 %v473, %v471
    %v578 = vpack.c.b16 %v476, %v474
    %v579 = vpack.c.b16 %v477, %v475
    %v580 = vpack.c.b16 %v480, %v478
    %v581 = vpack.c.b16 %v481, %v479
    %v582 = vpack.c.b16 %v484, %v482
    %v583 = vpack.c.b16 %v485, %v483
    %vm682 = vcmask 130048
    %v684 = vsel %vm682, %v185, 0
    %686 = vmatpush.bf16.msra.mxu0 %v500
    %687 = vmatpush.bf16.msra.mxu0 %v498
    %688 = vmatpush.bf16.msra.mxu0 %v496
    %689 = vmatpush.bf16.msra.mxu0 %v494
    %690 = vmatpush.bf16.msra.mxu0 %v492
    %691 = vmatpush.bf16.msra.mxu0 %v490
    %692 = vmatpush.bf16.msra.mxu0 %v488
    %693 = vmatpush.bf16.msra.mxu0 %v486
    %694 = vmatmul.bf16.gmra.mxu0 %v179
    %v695 = vpop.f32.mrf.mxu0
    %v696 = vadd.f32 %v164, %v695
    %v697 = vpop.f32.mrf.mxu0
    %698 = vdwg.mxu0
    %699 = vmatpush.bf16.msra.mxu0 %v516
    %700 = vmatpush.bf16.msra.mxu0 %v514
    %701 = vmatpush.bf16.msra.mxu0 %v512
    %702 = vmatpush.bf16.msra.mxu0 %v510
    %703 = vmatpush.bf16.msra.mxu0 %v508
    %704 = vmatpush.bf16.msra.mxu0 %v506
    %705 = vmatpush.bf16.msra.mxu0 %v504
    %706 = vmatpush.bf16.msra.mxu0 %v502
    %707 = vmatmul.bf16.gmra.mxu0 %v180
    %v708 = vpop.f32.mrf.mxu0
    %v709 = vadd.f32 %v696, %v708
    %v710 = vpop.f32.mrf.mxu0
    %711 = vdwg.mxu0
    %712 = vmatpush.bf16.msra.mxu0 %v532
    %713 = vmatpush.bf16.msra.mxu0 %v530
    %714 = vmatpush.bf16.msra.mxu0 %v528
    %715 = vmatpush.bf16.msra.mxu0 %v526
    %716 = vmatpush.bf16.msra.mxu0 %v524
    %717 = vmatpush.bf16.msra.mxu0 %v522
    %718 = vmatpush.bf16.msra.mxu0 %v520
    %719 = vmatpush.bf16.msra.mxu0 %v518
    %720 = vmatmul.bf16.gmra.mxu0 %v181
    %v721 = vpop.f32.mrf.mxu0
    %v722 = vadd.f32 %v709, %v721
    %v723 = vpop.f32.mrf.mxu0
    %724 = vdwg.mxu0
    %725 = vmatpush.bf16.msra.mxu0 %v548
    %726 = vmatpush.bf16.msra.mxu0 %v546
    %727 = vmatpush.bf16.msra.mxu0 %v544
    %728 = vmatpush.bf16.msra.mxu0 %v542
    %729 = vmatpush.bf16.msra.mxu0 %v540
    %730 = vmatpush.bf16.msra.mxu0 %v538
    %731 = vmatpush.bf16.msra.mxu0 %v536
    %732 = vmatpush.bf16.msra.mxu0 %v534
    %733 = vmatmul.bf16.gmra.mxu0 %v182
    %v734 = vpop.f32.mrf.mxu0
    %v735 = vadd.f32 %v722, %v734
    %v736 = vpop.f32.mrf.mxu0
    %737 = vdwg.mxu0
    %738 = vmatpush.bf16.msra.mxu0 %v564
    %739 = vmatpush.bf16.msra.mxu0 %v562
    %740 = vmatpush.bf16.msra.mxu0 %v560
    %741 = vmatpush.bf16.msra.mxu0 %v558
    %742 = vmatpush.bf16.msra.mxu0 %v556
    %743 = vmatpush.bf16.msra.mxu0 %v554
    %744 = vmatpush.bf16.msra.mxu0 %v552
    %745 = vmatpush.bf16.msra.mxu0 %v550
    %746 = vmatmul.bf16.gmra.mxu0 %v183
    %v747 = vpop.f32.mrf.mxu0
    %v748 = vadd.f32 %v735, %v747
    %v749 = vpop.f32.mrf.mxu0
    %750 = vdwg.mxu0
    %751 = vmatpush.bf16.msra.mxu0 %v580
    %752 = vmatpush.bf16.msra.mxu0 %v578
    %753 = vmatpush.bf16.msra.mxu0 %v576
    %754 = vmatpush.bf16.msra.mxu0 %v574
    %755 = vmatpush.bf16.msra.mxu0 %v572
    %756 = vmatpush.bf16.msra.mxu0 %v570
    %757 = vmatpush.bf16.msra.mxu0 %v568
    %758 = vmatpush.bf16.msra.mxu0 %v566
    %759 = vmatmul.bf16.gmra.mxu0 %v184
    %v760 = vpop.f32.mrf.mxu0
    %v761 = vadd.f32 %v748, %v760
    %v762 = vpop.f32.mrf.mxu0
    %763 = vdwg.mxu0
    %764 = vmatpush.bf16.msra.mxu0 0
    %765 = vmatpush.bf16.msra.mxu0 0
    %766 = vmatpush.bf16.msra.mxu0 0
    %767 = vmatpush.bf16.msra.mxu0 0
    %768 = vmatpush.bf16.msra.mxu0 0
    %769 = vmatpush.bf16.msra.mxu0 0
    %770 = vmatpush.bf16.msra.mxu0 0
    %771 = vmatpush.bf16.msra.mxu0 %v582
    %772 = vmatmul.bf16.gmra.mxu0 %v684
    %v773 = vpop.f32.mrf.mxu0
    %v774 = vadd.f32 %v761, %v773
    %v775 = vpop.f32.mrf.mxu0
    %776 = vdwg.mxu0
    %777 = vmatpush.bf16.msra.mxu0 %v501
    %778 = vmatpush.bf16.msra.mxu0 %v499
    %779 = vmatpush.bf16.msra.mxu0 %v497
    %780 = vmatpush.bf16.msra.mxu0 %v495
    %781 = vmatpush.bf16.msra.mxu0 %v493
    %782 = vmatpush.bf16.msra.mxu0 %v491
    %783 = vmatpush.bf16.msra.mxu0 %v489
    %784 = vmatpush.bf16.msra.mxu0 %v487
    %785 = vmatmul.bf16.gmra.mxu0 %v179
    %v786 = vpop.f32.mrf.mxu0
    %v787 = vadd.f32 %v165, %v786
    %v788 = vpop.f32.mrf.mxu0
    %789 = vdwg.mxu0
    %790 = vmatpush.bf16.msra.mxu0 %v517
    %791 = vmatpush.bf16.msra.mxu0 %v515
    %792 = vmatpush.bf16.msra.mxu0 %v513
    %793 = vmatpush.bf16.msra.mxu0 %v511
    %794 = vmatpush.bf16.msra.mxu0 %v509
    %795 = vmatpush.bf16.msra.mxu0 %v507
    %796 = vmatpush.bf16.msra.mxu0 %v505
    %797 = vmatpush.bf16.msra.mxu0 %v503
    %798 = vmatmul.bf16.gmra.mxu0 %v180
    %v799 = vpop.f32.mrf.mxu0
    %v800 = vadd.f32 %v787, %v799
    %v801 = vpop.f32.mrf.mxu0
    %802 = vdwg.mxu0
    %803 = vmatpush.bf16.msra.mxu0 %v533
    %804 = vmatpush.bf16.msra.mxu0 %v531
    %805 = vmatpush.bf16.msra.mxu0 %v529
    %806 = vmatpush.bf16.msra.mxu0 %v527
    %807 = vmatpush.bf16.msra.mxu0 %v525
    %808 = vmatpush.bf16.msra.mxu0 %v523
    %809 = vmatpush.bf16.msra.mxu0 %v521
    %810 = vmatpush.bf16.msra.mxu0 %v519
    %811 = vmatmul.bf16.gmra.mxu0 %v181
    %v812 = vpop.f32.mrf.mxu0
    %v813 = vadd.f32 %v800, %v812
    %v814 = vpop.f32.mrf.mxu0
    %815 = vdwg.mxu0
    %816 = vmatpush.bf16.msra.mxu0 %v549
    %817 = vmatpush.bf16.msra.mxu0 %v547
    %818 = vmatpush.bf16.msra.mxu0 %v545
    %819 = vmatpush.bf16.msra.mxu0 %v543
    %820 = vmatpush.bf16.msra.mxu0 %v541
    %821 = vmatpush.bf16.msra.mxu0 %v539
    %822 = vmatpush.bf16.msra.mxu0 %v537
    %823 = vmatpush.bf16.msra.mxu0 %v535
    %824 = vmatmul.bf16.gmra.mxu0 %v182
    %v825 = vpop.f32.mrf.mxu0
    %v826 = vadd.f32 %v813, %v825
    %v827 = vpop.f32.mrf.mxu0
    %828 = vdwg.mxu0
    %829 = vmatpush.bf16.msra.mxu0 %v565
    %830 = vmatpush.bf16.msra.mxu0 %v563
    %831 = vmatpush.bf16.msra.mxu0 %v561
    %832 = vmatpush.bf16.msra.mxu0 %v559
    %833 = vmatpush.bf16.msra.mxu0 %v557
    %834 = vmatpush.bf16.msra.mxu0 %v555
    %835 = vmatpush.bf16.msra.mxu0 %v553
    %836 = vmatpush.bf16.msra.mxu0 %v551
    %837 = vmatmul.bf16.gmra.mxu0 %v183
    %v838 = vpop.f32.mrf.mxu0
    %v839 = vadd.f32 %v826, %v838
    %v840 = vpop.f32.mrf.mxu0
    %841 = vdwg.mxu0
    %842 = vmatpush.bf16.msra.mxu0 %v581
    %843 = vmatpush.bf16.msra.mxu0 %v579
    %844 = vmatpush.bf16.msra.mxu0 %v577
    %845 = vmatpush.bf16.msra.mxu0 %v575
    %846 = vmatpush.bf16.msra.mxu0 %v573
    %847 = vmatpush.bf16.msra.mxu0 %v571
    %848 = vmatpush.bf16.msra.mxu0 %v569
    %849 = vmatpush.bf16.msra.mxu0 %v567
    %850 = vmatmul.bf16.gmra.mxu0 %v184
    %v851 = vpop.f32.mrf.mxu0
    %v852 = vadd.f32 %v839, %v851
    %v853 = vpop.f32.mrf.mxu0
    %854 = vdwg.mxu0
    %855 = vmatpush.bf16.msra.mxu0 0
    %856 = vmatpush.bf16.msra.mxu0 0
    %857 = vmatpush.bf16.msra.mxu0 0
    %858 = vmatpush.bf16.msra.mxu0 0
    %859 = vmatpush.bf16.msra.mxu0 0
    %860 = vmatpush.bf16.msra.mxu0 0
    %861 = vmatpush.bf16.msra.mxu0 0
    %862 = vmatpush.bf16.msra.mxu0 %v583
    %863 = vmatmul.bf16.gmra.mxu0 %v684
    %v864 = vpop.f32.mrf.mxu0
    %v865 = vadd.f32 %v852, %v864
    %v866 = vpop.f32.mrf.mxu0
    %867 = vdwg.mxu0
    %v868 = vmax.f32 %v774, 0.0
    %v869 = vmax.f32 %v865, 0.0
    %v870 = vpack.c.bf16 %v868, %v868
    %v871 = vpack.c.bf16 %v869, %v869
    %v872 = vld [vmem:[#allocation5] sm:$0xf]
    %v873 = vld [vmem:[#allocation5 + $0x4] sm:$0xf]
    %v874 = vld [vmem:[#allocation5 + $0x8] sm:$0xf]
    %v875 = vld [vmem:[#allocation5 + $0xc] sm:$0xf]
    %v876 = vld [vmem:[#allocation5 + $0x10] sm:$0xf]
    %v877 = vld [vmem:[#allocation5 + $0x14] sm:$0xf]
    %v878 = vld [vmem:[#allocation5 + $0x18] sm:$0xf]
    %v879 = vld [vmem:[#allocation5 + $0x1c] sm:$0xf]
    %v880 = vld [vmem:[#allocation5 + $0x20] sm:$0xf]
    %v881 = vld [vmem:[#allocation5 + $0x24] sm:$0xf]
    %v882 = vld [vmem:[#allocation5 + $0x28] sm:$0xf]
    %v883 = vld [vmem:[#allocation5 + $0x2c] sm:$0xf]
    %v884 = vld [vmem:[#allocation5 + $0x30] sm:$0xf]
    %v885 = vld [vmem:[#allocation5 + $0x34] sm:$0xf]
    %v886 = vld [vmem:[#allocation5 + $0x38] sm:$0xf]
    %v887 = vld [vmem:[#allocation5 + $0x3c] sm:$0xf]
    %v888 = vld [vmem:[#allocation5 + $0x40] sm:$0xf]
    %v889 = vld [vmem:[#allocation5 + $0x44] sm:$0xf]
    %v890 = vld [vmem:[#allocation5 + $0x48] sm:$0xf]
    %v891 = vld [vmem:[#allocation5 + $0x4c] sm:$0xf]
    %v892 = vld [vmem:[#allocation5 + $0x50] sm:$0xf]
    %v893 = vld [vmem:[#allocation5 + $0x54] sm:$0xf]
    %v894 = vld [vmem:[#allocation5 + $0x58] sm:$0xf]
    %v895 = vld [vmem:[#allocation5 + $0x5c] sm:$0xf]
    %v896 = vld [vmem:[#allocation5 + $0x60] sm:$0xf]
    %v897 = vld [vmem:[#allocation5 + $0x64] sm:$0xf]
    %v898 = vld [vmem:[#allocation5 + $0x68] sm:$0xf]
    %v899 = vld [vmem:[#allocation5 + $0x6c] sm:$0xf]
    %v900 = vld [vmem:[#allocation5 + $0x70] sm:$0xf]
    %v901 = vld [vmem:[#allocation5 + $0x74] sm:$0xf]
    %v902 = vld [vmem:[#allocation5 + $0x78] sm:$0xf]
    %v903 = vld [vmem:[#allocation5 + $0x7c] sm:$0xf]
    %v904 = vld [vmem:[%s4] sm:$0x1]
    %v906 = vperm.slane %v904, 0
    %v940 = vunpack.c.l.b16 %v872
    %v941 = vunpack.c.l.b16 %v873
    %v942 = vunpack.c.l.b16 %v874
    %v943 = vunpack.c.l.b16 %v875
    %v944 = vunpack.c.l.b16 %v876
    %v945 = vunpack.c.l.b16 %v877
    %v946 = vunpack.c.l.b16 %v878
    %v947 = vunpack.c.l.b16 %v879
    %v948 = vunpack.c.l.b16 %v880
    %v949 = vunpack.c.l.b16 %v881
    %v950 = vunpack.c.l.b16 %v882
    %v951 = vunpack.c.l.b16 %v883
    %v952 = vunpack.c.l.b16 %v884
    %v953 = vunpack.c.l.b16 %v885
    %v954 = vunpack.c.l.b16 %v886
    %v955 = vunpack.c.l.b16 %v887
    %v956 = vunpack.c.l.b16 %v888
    %v957 = vunpack.c.l.b16 %v889
    %v958 = vunpack.c.l.b16 %v890
    %v959 = vunpack.c.l.b16 %v891
    %v960 = vunpack.c.l.b16 %v892
    %v961 = vunpack.c.l.b16 %v893
    %v962 = vunpack.c.l.b16 %v894
    %v963 = vunpack.c.l.b16 %v895
    %v964 = vunpack.c.l.b16 %v896
    %v965 = vunpack.c.l.b16 %v897
    %v966 = vunpack.c.l.b16 %v898
    %v967 = vunpack.c.l.b16 %v899
    %v968 = vunpack.c.l.b16 %v900
    %v969 = vunpack.c.l.b16 %v901
    %v970 = vunpack.c.l.b16 %v902
    %v971 = vunpack.c.l.b16 %v903
    %v972 = vpack.c.b16 %v941, %v940
    %v973 = vpack.c.b16 %v943, %v942
    %v974 = vpack.c.b16 %v945, %v944
    %v975 = vpack.c.b16 %v947, %v946
    %v976 = vpack.c.b16 %v949, %v948
    %v977 = vpack.c.b16 %v951, %v950
    %v978 = vpack.c.b16 %v953, %v952
    %v979 = vpack.c.b16 %v955, %v954
    %v980 = vpack.c.b16 %v957, %v956
    %v981 = vpack.c.b16 %v959, %v958
    %v982 = vpack.c.b16 %v961, %v960
    %v983 = vpack.c.b16 %v963, %v962
    %v984 = vpack.c.b16 %v965, %v964
    %v985 = vpack.c.b16 %v967, %v966
    %v986 = vpack.c.b16 %v969, %v968
    %v987 = vpack.c.b16 %v971, %v970
    %1004 = vmatpush.bf16.msra.mxu0 %v979
    %1005 = vmatpush.bf16.msra.mxu0 %v978
    %1006 = vmatpush.bf16.msra.mxu0 %v977
    %1007 = vmatpush.bf16.msra.mxu0 %v976
    %1008 = vmatpush.bf16.msra.mxu0 %v975
    %1009 = vmatpush.bf16.msra.mxu0 %v974
    %1010 = vmatpush.bf16.msra.mxu0 %v973
    %1011 = vmatpush.bf16.msra.mxu0 %v972
    %1012 = vmatmul.bf16.gmra.mxu0 %v870
    %v1013 = vpop.f32.mrf.mxu0
    %v1014 = vadd.f32 %v906, %v1013
    %v1015 = vpop.f32.mrf.mxu0
    %1016 = vdwg.mxu0
    %1017 = vmatpush.bf16.msra.mxu0 %v987
    %1018 = vmatpush.bf16.msra.mxu0 %v986
    %1019 = vmatpush.bf16.msra.mxu0 %v985
    %1020 = vmatpush.bf16.msra.mxu0 %v984
    %1021 = vmatpush.bf16.msra.mxu0 %v983
    %1022 = vmatpush.bf16.msra.mxu0 %v982
    %1023 = vmatpush.bf16.msra.mxu0 %v981
    %1024 = vmatpush.bf16.msra.mxu0 %v980
    %1025 = vmatmul.bf16.gmra.mxu0 %v871
    %v1026 = vpop.f32.mrf.mxu0
    %v1027 = vadd.f32 %v1014, %v1026
    %v1028 = vpop.f32.mrf.mxu0
    %1029 = vdwg.mxu0
    %v1030 = vpack.c.bf16 %v1027, %v1027
    %v1031 = vld [vmem:[%s5] sm:$0xf]
    %v1032 = vld [vmem:[%s5 + $0x4] sm:$0xf]
    %v1033 = vld [vmem:[%s5 + $0x8] sm:$0xf]
    %v1034 = vld [vmem:[%s5 + $0xc] sm:$0xf]
    %v1035 = vld [vmem:[%s5 + $0x10] sm:$0xf]
    %v1036 = vld [vmem:[%s5 + $0x14] sm:$0xf]
    %v1037 = vld [vmem:[%s5 + $0x18] sm:$0xf]
    %v1038 = vld [vmem:[%s5 + $0x1c] sm:$0xf]
    %v1039 = vld [vmem:[%s5 + $0x20] sm:$0xf]
    %v1040 = vld [vmem:[%s5 + $0x24] sm:$0xf]
    %v1041 = vld [vmem:[%s5 + $0x28] sm:$0xf]
    %v1042 = vld [vmem:[%s5 + $0x2c] sm:$0xf]
    %v1043 = vld [vmem:[%s5 + $0x30] sm:$0xf]
    %v1044 = vld [vmem:[%s5 + $0x34] sm:$0xf]
    %v1045 = vld [vmem:[%s5 + $0x38] sm:$0xf]
    %v1046 = vld [vmem:[%s5 + $0x3c] sm:$0xf]
    %v1047 = vld [vmem:[%s6] sm:$0x1]
    %v1049 = vperm.slane %v1047, 0
    %v1067 = vunpack.c.l.b16 %v1031
    %v1068 = vunpack.c.l.b16 %v1032
    %v1069 = vunpack.c.l.b16 %v1033
    %v1070 = vunpack.c.l.b16 %v1034
    %v1071 = vunpack.c.l.b16 %v1035
    %v1072 = vunpack.c.l.b16 %v1036
    %v1073 = vunpack.c.l.b16 %v1037
    %v1074 = vunpack.c.l.b16 %v1038
    %v1075 = vunpack.c.l.b16 %v1039
    %v1076 = vunpack.c.l.b16 %v1040
    %v1077 = vunpack.c.l.b16 %v1041
    %v1078 = vunpack.c.l.b16 %v1042
    %v1079 = vunpack.c.l.b16 %v1043
    %v1080 = vunpack.c.l.b16 %v1044
    %v1081 = vunpack.c.l.b16 %v1045
    %v1082 = vunpack.c.l.b16 %v1046
    %v1083 = vpack.c.b16 %v1068, %v1067
    %v1084 = vpack.c.b16 %v1070, %v1069
    %v1085 = vpack.c.b16 %v1072, %v1071
    %v1086 = vpack.c.b16 %v1074, %v1073
    %v1087 = vpack.c.b16 %v1076, %v1075
    %v1088 = vpack.c.b16 %v1078, %v1077
    %v1089 = vpack.c.b16 %v1080, %v1079
    %v1090 = vpack.c.b16 %v1082, %v1081
    %1099 = vmatpush.bf16.msra.mxu0 %v1090
    %1100 = vmatpush.bf16.msra.mxu0 %v1089
    %1101 = vmatpush.bf16.msra.mxu0 %v1088
    %1102 = vmatpush.bf16.msra.mxu0 %v1087
    %1103 = vmatpush.bf16.msra.mxu0 %v1086
    %1104 = vmatpush.bf16.msra.mxu0 %v1085
    %1105 = vmatpush.bf16.msra.mxu0 %v1084
    %1106 = vmatpush.bf16.msra.mxu0 %v1083
    %1107 = vmatmul.bf16.gmra.mxu0 %v1030
    %v1108 = vpop.f32.mrf.mxu0
    %v1109 = vadd.f32 %v1049, %v1108
    %v1110 = vpop.f32.mrf.mxu0
    %1111 = vdwg.mxu0
    %vm1112 = vcmask 80896
    %1113 = vst.msk [vmem:[#allocation7] sm:$0xff] %vm1112, %v1109
    // Predicated region
    $region38: #{tpu_custom_call.1} parent=1 // pred_check
      _
    $region39: #{tpu_custom_call.1} parent=1 // pred_check_branch
      %1115 = sbr.rel (0) target = $region41
    $region40: #{tpu_custom_call.1} parent=1 // pred_region
      %1117 = vsyncadd [#allocation4], 0
      %s1119 = sshll.u32 [#allocation7], 4
      %s1120 = int_to_ptr.vmem [resolvable:$true] %s1119
      %s1121 = sshll.u32 %s7, 4
      %s1122 = int_to_ptr.hbm [resolvable:$true] %s1121
      %1124 = dma.vmem_to_hbm [thread:$0]  %s1120, 128, %s1122, [#allocation4]
    $region41: #{tpu_custom_call.1} parent=1 // pred_fallthru
      _
    // Predicated region
    $region42: #{tpu_custom_call.1} parent=1 // pred_check
      _
    $region43: #{tpu_custom_call.1} parent=1 // pred_check_branch
      %1126 = sbr.rel (0) target = $region45
    $region44: #{tpu_custom_call.1} parent=1 // pred_region
      %1128 = dma.done [#allocation4], 128
    $region45: #{tpu_custom_call.1} parent=1 // pred_fallthru
      _
    %1129 = vsyncpa [#allocation3], 1
    %1130 = vsyncpa [#allocation6], 1
    %1131 = vsyncpa [#allocation4], 1

</llo_original>
